<compile_context>
chip_gen: v5e
topology: v5e:2x2
jax: 0.10.0
libtpu: 0.0.40
codegen_flags: <defaults>
</compile_context>

<pallas_src>
import functools

import jax
import jax.numpy as jnp
from jax import lax
from jax.experimental import pallas as pl
from jax.experimental.pallas import tpu as pltpu


def _cdiv(a, b):
    return -(-a // b)


def _round_up(x, m):
    return _cdiv(x, m) * m


def _per_row_nll(x_ref, y_ref, use_mxu):
    """Per-row negative log-likelihood for one head: (tn, 1) float32."""
    x = x_ref[...].astype(jnp.float32)                  # in-kernel f32 upcast
    tn, c = x.shape
    m = jnp.max(x, axis=-1, keepdims=True)              # XLU lane reduce (only one kept there)
    e = jnp.exp(x - m)                                  # EUP
    lane = lax.broadcasted_iota(jnp.int32, (tn, c), 1)
    tgt_sel = jnp.where(lane == y_ref[...], x, 0.0)     # fused target-logit gather
    if use_mxu:
        # Offload the two lane sums to the idle MXU (dot with a ones vector).
        ones = jnp.ones((c, 1), jnp.float32)
        se = jnp.dot(e, ones, preferred_element_type=jnp.float32)
        tgt = jnp.dot(tgt_sel, ones, preferred_element_type=jnp.float32)
    else:                                               # tiny C: plain lane sums
        se = jnp.sum(e, axis=-1, keepdims=True)
        tgt = jnp.sum(tgt_sel, axis=-1, keepdims=True)
    return m + jnp.log(se) - tgt                        # lse - target_logit


def _fused_ce_kernel(*refs, n_rows, tile_n, steps_per_core, use_mxu, ragged):
    """One batch tile of all heads; accumulates the summed NLL into o_ref."""
    o_ref = refs[-1]                                    # (1, 1, 1) per-core accumulator
    n_heads = (len(refs) - 1) // 2
    core = pl.program_id(0)
    step = pl.program_id(1)

    @pl.when(step == 0)
    def _():
        o_ref[...] = jnp.zeros_like(o_ref)

    per_row = jnp.zeros((tile_n, 1), jnp.float32)
    for h in range(n_heads):
        per_row = per_row + _per_row_nll(refs[2 * h], refs[2 * h + 1], use_mxu[h])

    if ragged:
        # Rows past N (padded last tile / fully-empty clamped tiles) contribute 0.
        # NOTE: keep this as a select (jnp.where), NOT multiplicative masking,
        # so NaN/Inf from padded garbage rows cannot propagate.
        gtile = core * steps_per_core + step
        row = gtile * tile_n + lax.broadcasted_iota(jnp.int32, (tile_n, 1), 0)
        per_row = jnp.where(row < n_rows, per_row, 0.0)

    o_ref[...] += jnp.sum(per_row).reshape(1, 1, 1)


def _logits_spec(tn, c, row_map, deep_buffer):
    """Logits BlockSpec; request 3-deep buffering for small tiles when supported."""
    if deep_buffer and hasattr(pl, "Buffered"):
        try:
            return pl.BlockSpec((tn, c), row_map, pipeline_mode=pl.Buffered(3))
        except TypeError:   # BlockSpec without pipeline_mode support
            pass
    return pl.BlockSpec((tn, c), row_map)


def multi_class_loss(pred1, pred2, pred3, y1, y2, y3, *,
                     num_cores=1, max_tile_n=None, mxu_min_classes=128):
    """Pallas equivalent of MultiClassLoss.forward: CE(p1,y1)+CE(p2,y2)+CE(p3,y3).

    All heads share the batch axis (as in the module), so the three losses are
    computed in one fused pallas_call.  On v7x pass num_cores=2 to split the
    batch across both TensorCores; leave at 1 on v5e/v6e.
    """
    # TODO(synk): auto-detect the TensorCore count (v7x has 2) instead of the
    # num_cores parameter once a stable query for it is available.
    preds = (pred1, pred2, pred3)
    labels = (y1, y2, y3)
    n = int(pred1.shape[0])
    assert all(int(p.shape[0]) == n for p in preds)
    assert all(y.shape == (n,) for y in labels)

    class_counts = tuple(int(p.shape[1]) for p in preds)
    use_mxu = tuple(c >= mxu_min_classes for c in class_counts)
    labels2d = tuple(y.astype(jnp.int32).reshape(n, 1) for y in labels)

    # ---- per-generation VMEM budget ----------------------------------------
    try:
        vmem_cap = int(pltpu.get_tpu_info().vmem_capacity_bytes)
    except Exception:
        vmem_cap = 64 * 1024 * 1024        # conservative: v7x per-TensorCore VMEM

    itemsizes = [jnp.dtype(p.dtype).itemsize for p in preds]
    row_bytes = sum(c * it for c, it in zip(class_counts, itemsizes)) + 4 * len(preds)
    row_align = max(8, 32 // min(itemsizes))   # sublane packing: 8 f32 / 16 bf16 / 32 int8

    tile_budget = vmem_cap // 5                # single-copy tile ~20% of VMEM
    tn = tile_budget // max(1, row_bytes)
    if max_tile_n is not None:
        tn = min(tn, int(max_tile_n))
    tn = min(tn, _round_up(n, row_align))
    tn = max(row_align, (tn // row_align) * row_align)

    n_tiles = _cdiv(n, tn)
    num_cores = max(1, int(num_cores))
    steps_per_core = _cdiv(n_tiles, num_cores)
    last_tile = n_tiles - 1
    clamp = num_cores * steps_per_core > n_tiles     # fully-empty trailing tiles exist
    ragged = num_cores * steps_per_core * tn != n    # any grid rows beyond N

    if clamp:
        def tile_idx(c, i):
            return jnp.minimum(c * steps_per_core + i, last_tile)
    else:
        def tile_idx(c, i):
            return c * steps_per_core + i

    def row_map(c, i):
        return (tile_idx(c, i), 0)

    # Third stream buffer only pays off for small tiles on a deep grid.
    deep_buffer = steps_per_core > 2 and tn * row_bytes < (4 << 20)

    in_specs = []
    operands = []
    for c, p, y in zip(class_counts, preds, labels2d):
        in_specs.append(_logits_spec(tn, c, row_map, deep_buffer))   # unpadded class axis
        in_specs.append(pl.BlockSpec((tn, 1), row_map))              # labels
        operands.extend((p, y))

    kernel = functools.partial(
        _fused_ce_kernel, n_rows=n, tile_n=tn, steps_per_core=steps_per_core,
        use_mxu=use_mxu, ragged=ragged)

    tile_io = 2 * tn * row_bytes                       # double-buffered input bytes
    vmem_limit = int(min(0.75 * vmem_cap, max(16 << 20, 4 * tile_io)))

    partials = pl.pallas_call(
        kernel,
        out_shape=jax.ShapeDtypeStruct((num_cores, 1, 1), jnp.float32),
        grid_spec=pltpu.PrefetchScalarGridSpec(
            num_scalar_prefetch=0,
            grid=(num_cores, steps_per_core),
            in_specs=in_specs,
            out_specs=pl.BlockSpec((1, 1, 1), lambda c, i: (c, 0, 0)),
        ),
        compiler_params=pltpu.CompilerParams(
            dimension_semantics=("parallel", "arbitrary"),
            vmem_limit_bytes=vmem_limit,
        ),
    )(*operands)

    # Scale by 1/N once (all heads share N), after summing per-core partials.
    return jnp.sum(partials) * jnp.float32(1.0 / n)


def _reference_ce(pred, y):
    # pure-JAX reference (log-softmax NLL, mean reduction)
    logp = jax.nn.log_softmax(pred.astype(jnp.float32), axis=-1)
    return -jnp.mean(logp[jnp.arange(pred.shape[0]), y])


if __name__ == "__main__":
    key = jax.random.PRNGKey(0)
    ks = jax.random.split(key, 12)

    # Primary check: module-scale demo (shared batch, differing class counts).
    N, C1, C2, C3 = 8, 10, 16, 12
    pred1 = jax.random.normal(ks[0], (N, C1), dtype=jnp.float32)
    pred2 = jax.random.normal(ks[1], (N, C2), dtype=jnp.float32)
    pred3 = jax.random.normal(ks[2], (N, C3), dtype=jnp.float32)
    y1 = jax.random.randint(ks[3], (N,), 0, C1, dtype=jnp.int32)
    y2 = jax.random.randint(ks[4], (N,), 0, C2, dtype=jnp.int32)
    y3 = jax.random.randint(ks[5], (N,), 0, C3, dtype=jnp.int32)

    loss = jax.block_until_ready(multi_class_loss(pred1, pred2, pred3, y1, y2, y3))
    ref = (_reference_ce(pred1, y1) + _reference_ce(pred2, y2) + _reference_ce(pred3, y3))
    assert jnp.allclose(loss, ref, rtol=1e-5, atol=1e-5), (loss, ref)

    # Secondary check: multi-tile grid with a ragged last tile, two-core partial
    # accumulators (v7x path, serial-but-correct on 1-TC chips), the MXU
    # lane-sum path (C >= 128, incl. a non-128-multiple C), and Buffered(3).
    Nb, Ca, Cb, Cc = 36, 256, 130, 64
    pa = jax.random.normal(ks[6], (Nb, Ca), dtype=jnp.float32)
    pb = jax.random.normal(ks[7], (Nb, Cb), dtype=jnp.float32)
    pc = jax.random.normal(ks[8], (Nb, Cc), dtype=jnp.float32)
    ya = jax.random.randint(ks[9], (Nb,), 0, Ca, dtype=jnp.int32)
    yb = jax.random.randint(ks[10], (Nb,), 0, Cb, dtype=jnp.int32)
    yc = jax.random.randint(ks[11], (Nb,), 0, Cc, dtype=jnp.int32)

    l2 = jax.block_until_ready(
        multi_class_loss(pa, pb, pc, ya, yb, yc, num_cores=2, max_tile_n=8))
    r2 = (_reference_ce(pa, ya) + _reference_ce(pb, yb) + _reference_ce(pc, yc))
    assert jnp.allclose(l2, r2, rtol=1e-5, atol=1e-5), (l2, r2)

    print("KERNEL_OK")
</pallas_src>

<mosaic_0001>
module attributes {stable_mosaic.version = 11 : i64} {
  func.func @_fused_ce_kernel(%arg0: i32, %arg1: i32, %arg2: memref<8x10xf32, #tpu.memory_space<vmem>>, %arg3: memref<8x1xi32, #tpu.memory_space<vmem>>, %arg4: memref<8x16xf32, #tpu.memory_space<vmem>>, %arg5: memref<8x1xi32, #tpu.memory_space<vmem>>, %arg6: memref<8x12xf32, #tpu.memory_space<vmem>>, %arg7: memref<8x1xi32, #tpu.memory_space<vmem>>, %arg8: memref<1x1x1xf32, #tpu.memory_space<vmem>>) attributes {dimension_semantics = [#tpu.dimension_semantics<parallel>, #tpu.dimension_semantics<arbitrary>], iteration_bounds = array<i64: 1, 1>, scalar_prefetch = 0 : i64, scratch_operands = 0 : i64, tpu.core_type = #tpu.core_type<tc>, window_params = [{transform_indices = @transform_0, window_bounds = array<i64: 8, 10>}, {transform_indices = @transform_1, window_bounds = array<i64: 8, 1>}, {transform_indices = @transform_2, window_bounds = array<i64: 8, 16>}, {transform_indices = @transform_3, window_bounds = array<i64: 8, 1>}, {transform_indices = @transform_4, window_bounds = array<i64: 8, 12>}, {transform_indices = @transform_5, window_bounds = array<i64: 8, 1>}, {transform_indices = @transform_6, window_bounds = array<i64: 1, 1, 1>}]} {
    %c0_i32 = arith.constant 0 : i32
    %0 = arith.cmpi eq, %arg1, %c0_i32 : i32
    %1 = arith.extui %0 : i1 to i32
    %c0_i32_0 = arith.constant 0 : i32
    %2 = arith.cmpi ne, %1, %c0_i32_0 : i32
    scf.if %2 {
      %cst_31 = arith.constant 0.000000e+00 : f32
      %72 = vector.broadcast %cst_31 : f32 to vector<1x1x1xf32>
      %c0_32 = arith.constant 0 : index
      %c0_33 = arith.constant 0 : index
      %c0_34 = arith.constant 0 : index
      %73 = vector.load %arg8[%c0_32, %c0_33, %c0_34] : memref<1x1x1xf32, #tpu.memory_space<vmem>>, vector<1x1x1xf32>
      tpu.vector_store %arg8[%c0_32, %c0_33, %c0_34], %72 {strides = array<i32>} : memref<1x1x1xf32, #tpu.memory_space<vmem>>, vector<1x1x1xf32>,
    } else {
    }
    %cst = arith.constant 0.000000e+00 : f32
    %3 = vector.broadcast %cst : f32 to vector<8x1xf32>
    %c0 = arith.constant 0 : index
    %c0_1 = arith.constant 0 : index
    %4 = vector.load %arg2[%c0, %c0_1] : memref<8x10xf32, #tpu.memory_space<vmem>>, vector<8x10xf32>
    %cst_2 = arith.constant dense<0xFF800000> : vector<8xf32>
    %5 = vector.multi_reduction <maximumf>, %4, %cst_2 [1] : vector<8x10xf32> to vector<8xf32>
    %6 = vector.shape_cast %5 : vector<8xf32> to vector<8x1xf32>
    %7 = vector.broadcast %6 : vector<8x1xf32> to vector<8x10xf32>
    %8 = arith.subf %4, %7 : vector<8x10xf32>
    %9 = math.exp %8 : vector<8x10xf32>
    %10 = tpu.iota {dimensions = array<i32: 1>} : vector<8x10xi32>
    %c0_3 = arith.constant 0 : index
    %c0_4 = arith.constant 0 : index
    %11 = vector.load %arg3[%c0_3, %c0_4] : memref<8x1xi32, #tpu.memory_space<vmem>>, vector<8x1xi32>
    %12 = vector.broadcast %11 : vector<8x1xi32> to vector<8x10xi32>
    %13 = arith.cmpi eq, %10, %12 : vector<8x10xi32>
    %cst_5 = arith.constant 0.000000e+00 : f32
    %14 = vector.broadcast %cst_5 : f32 to vector<8x10xf32>
    %15 = arith.select %13, %4, %14 : vector<8x10xi1>, vector<8x10xf32>
    %cst_6 = arith.constant dense<0.000000e+00> : vector<8xf32>
    %16 = vector.multi_reduction <add>, %9, %cst_6 [1] : vector<8x10xf32> to vector<8xf32>
    %17 = vector.shape_cast %16 : vector<8xf32> to vector<8x1xf32>
    %cst_7 = arith.constant dense<0.000000e+00> : vector<8xf32>
    %18 = vector.multi_reduction <add>, %15, %cst_7 [1] : vector<8x10xf32> to vector<8xf32>
    %19 = vector.shape_cast %18 : vector<8xf32> to vector<8x1xf32>
    %20 = math.log %17 : vector<8x1xf32>
    %21 = arith.addf %6, %20 : vector<8x1xf32>
    %22 = arith.subf %21, %19 : vector<8x1xf32>
    %23 = arith.addf %3, %22 : vector<8x1xf32>
    %c0_8 = arith.constant 0 : index
    %c0_9 = arith.constant 0 : index
    %24 = vector.load %arg4[%c0_8, %c0_9] : memref<8x16xf32, #tpu.memory_space<vmem>>, vector<8x16xf32>
    %cst_10 = arith.constant dense<0xFF800000> : vector<8xf32>
    %25 = vector.multi_reduction <maximumf>, %24, %cst_10 [1] : vector<8x16xf32> to vector<8xf32>
    %26 = vector.shape_cast %25 : vector<8xf32> to vector<8x1xf32>
    %27 = vector.broadcast %26 : vector<8x1xf32> to vector<8x16xf32>
    %28 = arith.subf %24, %27 : vector<8x16xf32>
    %29 = math.exp %28 : vector<8x16xf32>
    %30 = tpu.iota {dimensions = array<i32: 1>} : vector<8x16xi32>
    %c0_11 = arith.constant 0 : index
    %c0_12 = arith.constant 0 : index
    %31 = vector.load %arg5[%c0_11, %c0_12] : memref<8x1xi32, #tpu.memory_space<vmem>>, vector<8x1xi32>
    %32 = vector.broadcast %31 : vector<8x1xi32> to vector<8x16xi32>
    %33 = arith.cmpi eq, %30, %32 : vector<8x16xi32>
    %cst_13 = arith.constant 0.000000e+00 : f32
    %34 = vector.broadcast %cst_13 : f32 to vector<8x16xf32>
    %35 = arith.select %33, %24, %34 : vector<8x16xi1>, vector<8x16xf32>
    %cst_14 = arith.constant dense<0.000000e+00> : vector<8xf32>
    %36 = vector.multi_reduction <add>, %29, %cst_14 [1] : vector<8x16xf32> to vector<8xf32>
    %37 = vector.shape_cast %36 : vector<8xf32> to vector<8x1xf32>
    %cst_15 = arith.constant dense<0.000000e+00> : vector<8xf32>
    %38 = vector.multi_reduction <add>, %35, %cst_15 [1] : vector<8x16xf32> to vector<8xf32>
    %39 = vector.shape_cast %38 : vector<8xf32> to vector<8x1xf32>
    %40 = math.log %37 : vector<8x1xf32>
    %41 = arith.addf %26, %40 : vector<8x1xf32>
    %42 = arith.subf %41, %39 : vector<8x1xf32>
    %43 = arith.addf %23, %42 : vector<8x1xf32>
    %c0_16 = arith.constant 0 : index
    %c0_17 = arith.constant 0 : index
    %44 = vector.load %arg6[%c0_16, %c0_17] : memref<8x12xf32, #tpu.memory_space<vmem>>, vector<8x12xf32>
    %cst_18 = arith.constant dense<0xFF800000> : vector<8xf32>
    %45 = vector.multi_reduction <maximumf>, %44, %cst_18 [1] : vector<8x12xf32> to vector<8xf32>
    %46 = vector.shape_cast %45 : vector<8xf32> to vector<8x1xf32>
    %47 = vector.broadcast %46 : vector<8x1xf32> to vector<8x12xf32>
    %48 = arith.subf %44, %47 : vector<8x12xf32>
    %49 = math.exp %48 : vector<8x12xf32>
    %50 = tpu.iota {dimensions = array<i32: 1>} : vector<8x12xi32>
    %c0_19 = arith.constant 0 : index
    %c0_20 = arith.constant 0 : index
    %51 = vector.load %arg7[%c0_19, %c0_20] : memref<8x1xi32, #tpu.memory_space<vmem>>, vector<8x1xi32>
    %52 = vector.broadcast %51 : vector<8x1xi32> to vector<8x12xi32>
    %53 = arith.cmpi eq, %50, %52 : vector<8x12xi32>
    %cst_21 = arith.constant 0.000000e+00 : f32
    %54 = vector.broadcast %cst_21 : f32 to vector<8x12xf32>
    %55 = arith.select %53, %44, %54 : vector<8x12xi1>, vector<8x12xf32>
    %cst_22 = arith.constant dense<0.000000e+00> : vector<8xf32>
    %56 = vector.multi_reduction <add>, %49, %cst_22 [1] : vector<8x12xf32> to vector<8xf32>
    %57 = vector.shape_cast %56 : vector<8xf32> to vector<8x1xf32>
    %cst_23 = arith.constant dense<0.000000e+00> : vector<8xf32>
    %58 = vector.multi_reduction <add>, %55, %cst_23 [1] : vector<8x12xf32> to vector<8xf32>
    %59 = vector.shape_cast %58 : vector<8xf32> to vector<8x1xf32>
    %60 = math.log %57 : vector<8x1xf32>
    %61 = arith.addf %46, %60 : vector<8x1xf32>
    %62 = arith.subf %61, %59 : vector<8x1xf32>
    %63 = arith.addf %43, %62 : vector<8x1xf32>
    %c0_24 = arith.constant 0 : index
    %c0_25 = arith.constant 0 : index
    %c0_26 = arith.constant 0 : index
    %64 = vector.load %arg8[%c0_24, %c0_25, %c0_26] : memref<1x1x1xf32, #tpu.memory_space<vmem>>, vector<1x1x1xf32>
    %65 = vector.shape_cast %63 : vector<8x1xf32> to vector<1x8x1xf32>
    %cst_27 = arith.constant dense<0.000000e+00> : vector<1xf32>
    %66 = vector.multi_reduction <add>, %65, %cst_27 [1, 2] : vector<1x8x1xf32> to vector<1xf32>
    %67 = vector.shape_cast %66 : vector<1xf32> to vector<1x1x1xf32>
    %68 = vector.extract %67[0, 0, 0] : f32 from vector<1x1x1xf32>
    %69 = vector.broadcast %68 : f32 to vector<1x1x1xf32>
    %70 = arith.addf %64, %69 : vector<1x1x1xf32>
    %c0_28 = arith.constant 0 : index
    %c0_29 = arith.constant 0 : index
    %c0_30 = arith.constant 0 : index
    %71 = vector.load %arg8[%c0_28, %c0_29, %c0_30] : memref<1x1x1xf32, #tpu.memory_space<vmem>>, vector<1x1x1xf32>
    tpu.vector_store %arg8[%c0_28, %c0_29, %c0_30], %70 {strides = array<i32>} : memref<1x1x1xf32, #tpu.memory_space<vmem>>, vector<1x1x1xf32>,
    return
  }
  func.func @transform_0(%arg0: i32, %arg1: i32) -> (i32, i32) {
    %c1_i32 = arith.constant 1 : i32
    %0 = arith.muli %arg0, %c1_i32 : i32
    %1 = arith.addi %0, %arg1 : i32
    %c0_i32 = arith.constant 0 : i32
    %c0_i32_0 = arith.constant 0 : i32
    return %1, %c0_i32 : i32, i32
  }
  func.func @transform_1(%arg0: i32, %arg1: i32) -> (i32, i32) {
    %c1_i32 = arith.constant 1 : i32
    %0 = arith.muli %arg0, %c1_i32 : i32
    %1 = arith.addi %0, %arg1 : i32
    %c0_i32 = arith.constant 0 : i32
    %c0_i32_0 = arith.constant 0 : i32
    return %1, %c0_i32 : i32, i32
  }
  func.func @transform_2(%arg0: i32, %arg1: i32) -> (i32, i32) {
    %c1_i32 = arith.constant 1 : i32
    %0 = arith.muli %arg0, %c1_i32 : i32
    %1 = arith.addi %0, %arg1 : i32
    %c0_i32 = arith.constant 0 : i32
    %c0_i32_0 = arith.constant 0 : i32
    return %1, %c0_i32 : i32, i32
  }
  func.func @transform_3(%arg0: i32, %arg1: i32) -> (i32, i32) {
    %c1_i32 = arith.constant 1 : i32
    %0 = arith.muli %arg0, %c1_i32 : i32
    %1 = arith.addi %0, %arg1 : i32
    %c0_i32 = arith.constant 0 : i32
    %c0_i32_0 = arith.constant 0 : i32
    return %1, %c0_i32 : i32, i32
  }
  func.func @transform_4(%arg0: i32, %arg1: i32) -> (i32, i32) {
    %c1_i32 = arith.constant 1 : i32
    %0 = arith.muli %arg0, %c1_i32 : i32
    %1 = arith.addi %0, %arg1 : i32
    %c0_i32 = arith.constant 0 : i32
    %c0_i32_0 = arith.constant 0 : i32
    return %1, %c0_i32 : i32, i32
  }
  func.func @transform_5(%arg0: i32, %arg1: i32) -> (i32, i32) {
    %c1_i32 = arith.constant 1 : i32
    %0 = arith.muli %arg0, %c1_i32 : i32
    %1 = arith.addi %0, %arg1 : i32
    %c0_i32 = arith.constant 0 : i32
    %c0_i32_0 = arith.constant 0 : i32
    return %1, %c0_i32 : i32, i32
  }
  func.func @transform_6(%arg0: i32, %arg1: i32) -> (i32, i32, i32) {
    %c0_i32 = arith.constant 0 : i32
    %c0_i32_0 = arith.constant 0 : i32
    %c0_i32_1 = arith.constant 0 : i32
    return %arg0, %c0_i32, %c0_i32_0 : i32, i32, i32
  }
}

</mosaic_0001>

<llo_original>
// kernel: tpu_custom_call.1
$region0: #{tpu_custom_call.1}
  #allocation0 [shape = 'u32[]', space=smem, size = 0x4, offset = 0x4, fixed_abs, tag = 'smem constant byte address 0x4 - core index']
  #allocation1 [shape = 'u32[72,128]{1,0:T(1,128)}', space=vmem, size = 0x9000, scoped, tag = 'internal scratch']
  %s0 = inlined_call_operand.vmem [shape: f32[8,10], index: 0, kind: input, shape index: {}]
  %s1 = inlined_call_operand.vmem [shape: s32[8,1], index: 1, kind: input, shape index: {}]
  %s2 = inlined_call_operand.vmem [shape: f32[8,16], index: 2, kind: input, shape index: {}]
  %s3 = inlined_call_operand.vmem [shape: s32[8,1], index: 3, kind: input, shape index: {}]
  %s4 = inlined_call_operand.vmem [shape: f32[8,12], index: 4, kind: input, shape index: {}]
  %s5 = inlined_call_operand.vmem [shape: s32[8,1], index: 5, kind: input, shape index: {}]
  %s6 = inlined_call_operand.hbm [shape: f32[1,1,1], index: 6, kind: output, shape index: {}]
  %s7 = sld [smem:[#allocation0]]
  $region38: #{tpu_custom_call.1} parent=0
    _
  %s9 = ssub.s32 1, %s7
  %s10 = scalar_select 0, %s9, %s7
  $region1: #{tpu_custom_call.1} parent=0
    #allocation2 [shape = 'u8[512]{0}', space=vmem, size = 0x400, scoped, tag = 'output window, operand 0, single buffered']
    #allocation3 [shape = 's32[1]{0}', space=sflag, size = 0x4, scoped, tag = 'scoped memory for tpu_custom_call.1']
    %11 = vsyncpa [#allocation3], 0
    // Predicated region
    $region2: #{tpu_custom_call.1} parent=1 // pred_check
      _
    $region3: #{tpu_custom_call.1} parent=1 // pred_check_branch
      %13 = sbr.rel (0) target = $region5
    $region4: #{tpu_custom_call.1} parent=1 // pred_region
      %s14 = sadd.s32 0, 0
      %p15 = scmp.lt.s32.totalorder %s14, 0
      %s16 = scalar_select %p15, %s14, 0
      %s17 = smul.addr %s16, 8
      %s18 = scalar_lea.vmem %s0, %s17
      %s19 = sadd.s32 0, 0
    $region5: #{tpu_custom_call.1} parent=1 // pred_fallthru
      _
    // Predicated region
    $region6: #{tpu_custom_call.1} parent=1 // pred_check
      _
    $region7: #{tpu_custom_call.1} parent=1 // pred_check_branch
      %21 = sbr.rel (0) target = $region9
    $region8: #{tpu_custom_call.1} parent=1 // pred_region
      %s22 = sadd.s32 0, 0
      %p23 = scmp.lt.s32.totalorder %s22, 0
      %s24 = scalar_select %p23, %s22, 0
      %s25 = smul.addr %s24, 8
      %s26 = scalar_lea.vmem %s1, %s25
      %s27 = sadd.s32 0, 0
    $region9: #{tpu_custom_call.1} parent=1 // pred_fallthru
      _
    // Predicated region
    $region10: #{tpu_custom_call.1} parent=1 // pred_check
      _
    $region11: #{tpu_custom_call.1} parent=1 // pred_check_branch
      %29 = sbr.rel (0) target = $region13
    $region12: #{tpu_custom_call.1} parent=1 // pred_region
      %s30 = sadd.s32 0, 0
      %p31 = scmp.lt.s32.totalorder %s30, 0
      %s32 = scalar_select %p31, %s30, 0
      %s33 = smul.addr %s32, 8
      %s34 = scalar_lea.vmem %s2, %s33
      %s35 = sadd.s32 0, 0
    $region13: #{tpu_custom_call.1} parent=1 // pred_fallthru
      _
    // Predicated region
    $region14: #{tpu_custom_call.1} parent=1 // pred_check
      _
    $region15: #{tpu_custom_call.1} parent=1 // pred_check_branch
      %37 = sbr.rel (0) target = $region17
    $region16: #{tpu_custom_call.1} parent=1 // pred_region
      %s38 = sadd.s32 0, 0
      %p39 = scmp.lt.s32.totalorder %s38, 0
      %s40 = scalar_select %p39, %s38, 0
      %s41 = smul.addr %s40, 8
      %s42 = scalar_lea.vmem %s3, %s41
      %s43 = sadd.s32 0, 0
    $region17: #{tpu_custom_call.1} parent=1 // pred_fallthru
      _
    // Predicated region
    $region18: #{tpu_custom_call.1} parent=1 // pred_check
      _
    $region19: #{tpu_custom_call.1} parent=1 // pred_check_branch
      %45 = sbr.rel (0) target = $region21
    $region20: #{tpu_custom_call.1} parent=1 // pred_region
      %s46 = sadd.s32 0, 0
      %p47 = scmp.lt.s32.totalorder %s46, 0
      %s48 = scalar_select %p47, %s46, 0
      %s49 = smul.addr %s48, 8
      %s50 = scalar_lea.vmem %s4, %s49
      %s51 = sadd.s32 0, 0
    $region21: #{tpu_custom_call.1} parent=1 // pred_fallthru
      _
    // Predicated region
    $region22: #{tpu_custom_call.1} parent=1 // pred_check
      _
    $region23: #{tpu_custom_call.1} parent=1 // pred_check_branch
      %53 = sbr.rel (0) target = $region25
    $region24: #{tpu_custom_call.1} parent=1 // pred_region
      %s54 = sadd.s32 0, 0
      %p55 = scmp.lt.s32.totalorder %s54, 0
      %s56 = scalar_select %p55, %s54, 0
      %s57 = smul.addr %s56, 8
      %s58 = scalar_lea.vmem %s5, %s57
      %s59 = sadd.s32 0, 0
    $region25: #{tpu_custom_call.1} parent=1 // pred_fallthru
      _
    %s60 = sadd.s32 0, 0
    %p61 = scmp.lt.s32.totalorder %s60, 0
    %s62 = scalar_select %p61, %s60, 0
    %s63 = smul.addr %s62, 8
    %s64 = scalar_lea.vmem %s0, %s63
    %s65 = sadd.s32 0, 0
    %p66 = scmp.lt.s32.totalorder %s65, 0
    %s67 = scalar_select %p66, %s65, 0
    %s68 = smul.addr %s67, 8
    %s69 = scalar_lea.vmem %s1, %s68
    %s70 = sadd.s32 0, 0
    %p71 = scmp.lt.s32.totalorder %s70, 0
    %s72 = scalar_select %p71, %s70, 0
    %s73 = smul.addr %s72, 8
    %s74 = scalar_lea.vmem %s2, %s73
    %s75 = sadd.s32 0, 0
    %p76 = scmp.lt.s32.totalorder %s75, 0
    %s77 = scalar_select %p76, %s75, 0
    %s78 = smul.addr %s77, 8
    %s79 = scalar_lea.vmem %s3, %s78
    %s80 = sadd.s32 0, 0
    %p81 = scmp.lt.s32.totalorder %s80, 0
    %s82 = scalar_select %p81, %s80, 0
    %s83 = smul.addr %s82, 8
    %s84 = scalar_lea.vmem %s4, %s83
    %s85 = sadd.s32 0, 0
    %p86 = scmp.lt.s32.totalorder %s85, 0
    %s87 = scalar_select %p86, %s85, 0
    %s88 = smul.addr %s87, 8
    %s89 = scalar_lea.vmem %s5, %s88
    %s90 = sadd.s32 0, 0
    %p91 = scmp.lt.s32.totalorder %s90, 0
    %s92 = scalar_select %p91, %s90, 0
    %s93 = smul.addr %s92, 8
    %s94 = scalar_lea.vmem %s0, %s93
    %s95 = sadd.s32 0, 0
    %s96 = sadd.s32 0, 0
    %p97 = scmp.lt.s32.totalorder %s96, 0
    %s98 = scalar_select %p97, %s96, 0
    %s99 = smul.addr %s98, 8
    %s100 = scalar_lea.vmem %s1, %s99
    %s101 = sadd.s32 0, 0
    %s102 = sadd.s32 0, 0
    %p103 = scmp.lt.s32.totalorder %s102, 0
    %s104 = scalar_select %p103, %s102, 0
    %s105 = smul.addr %s104, 8
    %s106 = scalar_lea.vmem %s2, %s105
    %s107 = sadd.s32 0, 0
    %s108 = sadd.s32 0, 0
    %p109 = scmp.lt.s32.totalorder %s108, 0
    %s110 = scalar_select %p109, %s108, 0
    %s111 = smul.addr %s110, 8
    %s112 = scalar_lea.vmem %s3, %s111
    %s113 = sadd.s32 0, 0
    %s114 = sadd.s32 0, 0
    %p115 = scmp.lt.s32.totalorder %s114, 0
    %s116 = scalar_select %p115, %s114, 0
    %s117 = smul.addr %s116, 8
    %s118 = scalar_lea.vmem %s4, %s117
    %s119 = sadd.s32 0, 0
    %s120 = sadd.s32 0, 0
    %p121 = scmp.lt.s32.totalorder %s120, 0
    %s122 = scalar_select %p121, %s120, 0
    %s123 = smul.addr %s122, 8
    %s124 = scalar_lea.vmem %s5, %s123
    %s125 = sadd.s32 0, 0
    %p126 = scmp.eq.s32.totalorder 0, 0
    // Predicated region
    $region26: #{tpu_custom_call.1} parent=1 // pred_check
      %p127 = pneg %p126
    $region27: #{tpu_custom_call.1} parent=1 // pred_check_branch
      %129 = sbr.rel (%p127) target = $region29
    $region28: #{tpu_custom_call.1} parent=1 // pred_region
      %vm130 = vcmask 0
      %131 = vst.msk [vmem:[#allocation2] sm:$0x1] %vm130, 0.0
    $region29: #{tpu_custom_call.1} parent=1 // pred_fallthru
      _
    %v132 = vld [vmem:[%s94] sm:$0xff]
    %vm133 = vcmask 80896
    %v134 = vsel %vm133, %v132, -inf
    %135 = vmax.xlane.f32.xlu0 %v134
    %v136 = vpop.xlane.xlu0 %135
    %v137 = vsub.f32 %v132, %v136
    %v138 = vmul.f32 %v137, 1.442695
    %v139 = vpow.pop %v138
    %v140 = vlaneseq
    %v141 = vand.u32 %v140, 127
    %v142 = vld [vmem:[%s100] sm:$0xff]
    %143 = vset.pattern.permute.xlu0 0
    %144 = vperm.xlu0 %143, %v142
    %v145 = vpop.permute.xlu0 %144
    %vm146 = vcmp.eq.s32.totalorder %v141, %v145
    %v147 = vsel %vm146, %v132, 0.0
    %v148 = vsel %vm133, %v139, 0.0
    %149 = vadd.xlane.f32.xlu0 %v148
    %v150 = vpop.xlane.xlu0 %149
    %v151 = vsel %vm133, %v147, 0.0
    %152 = vadd.xlane.f32.xlu0 %v151
    %v153 = vpop.xlane.xlu0 %152
    %v154 = vlog2.pop %v150
    %v155 = vmul.f32 %v154, 0.6931472
    %v156 = vadd.f32 %v136, %v155
    %v157 = vsub.f32 %v156, %v153
    %v158 = vadd.f32 %v157, 0.0
    %v159 = vld [vmem:[%s106] sm:$0xff]
    %vm160 = vcmask 130048
    %v161 = vsel %vm160, %v159, -inf
    %162 = vmax.xlane.f32.xlu0 %v161
    %v163 = vpop.xlane.xlu0 %162
    %v164 = vsub.f32 %v159, %v163
    %v165 = vmul.f32 %v164, 1.442695
    %v166 = vpow.pop %v165
    %v167 = vld [vmem:[%s112] sm:$0xff]
    %168 = vset.pattern.permute.xlu0 0
    %169 = vperm.xlu0 %168, %v167
    %v170 = vpop.permute.xlu0 %169
    %vm171 = vcmp.eq.s32.totalorder %v141, %v170
    %v172 = vsel %vm171, %v159, 0.0
    %v173 = vsel %vm160, %v166, 0.0
    %174 = vadd.xlane.f32.xlu0 %v173
    %v175 = vpop.xlane.xlu0 %174
    %v176 = vsel %vm160, %v172, 0.0
    %177 = vadd.xlane.f32.xlu0 %v176
    %v178 = vpop.xlane.xlu0 %177
    %v179 = vlog2.pop %v175
    %v180 = vmul.f32 %v179, 0.6931472
    %v181 = vadd.f32 %v163, %v180
    %v182 = vsub.f32 %v181, %v178
    %v183 = vadd.f32 %v158, %v182
    %v184 = vld [vmem:[%s118] sm:$0xff]
    %vm185 = vcmask 97280
    %v186 = vsel %vm185, %v184, -inf
    %187 = vmax.xlane.f32.xlu0 %v186
    %v188 = vpop.xlane.xlu0 %187
    %v189 = vsub.f32 %v184, %v188
    %v190 = vmul.f32 %v189, 1.442695
    %v191 = vpow.pop %v190
    %v192 = vld [vmem:[%s124] sm:$0xff]
    %193 = vset.pattern.permute.xlu0 0
    %194 = vperm.xlu0 %193, %v192
    %v195 = vpop.permute.xlu0 %194
    %vm196 = vcmp.eq.s32.totalorder %v141, %v195
    %v197 = vsel %vm196, %v184, 0.0
    %v198 = vsel %vm185, %v191, 0.0
    %199 = vadd.xlane.f32.xlu0 %v198
    %v200 = vpop.xlane.xlu0 %199
    %v201 = vsel %vm185, %v197, 0.0
    %202 = vadd.xlane.f32.xlu0 %v201
    %v203 = vpop.xlane.xlu0 %202
    %v204 = vlog2.pop %v200
    %v205 = vmul.f32 %v204, 0.6931472
    %v206 = vadd.f32 %v188, %v205
    %v207 = vsub.f32 %v206, %v203
    %v208 = vadd.f32 %v183, %v207
    %v209 = vld [vmem:[#allocation2] sm:$0x1]
    %vm210 = vcmask 7168
    %v211 = vsel %vm210, %v208, 0.0
    %212 = vadd.xlane.f32.xlu0 %v211
    %v213 = vpop.xlane.xlu0 %212
    %v214 = vrot.slane %v213, 4
    %v215 = vadd.f32 %v213, %v214
    %v216 = vrot.slane %v215, 2
    %v217 = vadd.f32 %v215, %v216
    %v218 = vrot.slane %v217, 1
    %v219 = vadd.f32 %v217, %v218
    %s220 = vtos %v219
    %v221 = vstv %s220
    %v222 = vadd.f32 %v209, %v221
    %vm223 = vcmask 0
    %224 = vst.msk [vmem:[#allocation2] sm:$0x1] %vm223, %v222
    // Predicated region
    $region30: #{tpu_custom_call.1} parent=1 // pred_check
      _
    $region31: #{tpu_custom_call.1} parent=1 // pred_check_branch
      %226 = sbr.rel (0) target = $region33
    $region32: #{tpu_custom_call.1} parent=1 // pred_region
      %228 = vsyncadd [#allocation3], 0
      %s230 = sshll.u32 [#allocation2], 4
      %s231 = int_to_ptr.vmem [resolvable:$true] %s230
      %s232 = sshll.u32 %s6, 4
      %s233 = int_to_ptr.hbm [resolvable:$true] %s232
      %235 = dma.vmem_to_hbm [thread:$0]  %s231, 16, %s233, [#allocation3]
    $region33: #{tpu_custom_call.1} parent=1 // pred_fallthru
      _
    // Predicated region
    $region34: #{tpu_custom_call.1} parent=1 // pred_check
      _
    $region35: #{tpu_custom_call.1} parent=1 // pred_check_branch
      %237 = sbr.rel (0) target = $region37
    $region36: #{tpu_custom_call.1} parent=1 // pred_region
      %239 = dma.done [#allocation3], 16
    $region37: #{tpu_custom_call.1} parent=1 // pred_fallthru
      _
    %240 = vsyncpa [#allocation3], 1

</llo_original>
